<compile_context>
chip_gen: v7x
topology: tpu7x:2x2x1
jax: 0.10.0
libtpu: 0.0.40
codegen_flags: <defaults>
</compile_context>

<pallas_src>
import functools

import jax
import jax.numpy as jnp
import numpy as np
from jax.experimental import pallas as pl
from jax.experimental.pallas import tpu as pltpu


_TARGET_BLOCK_BYTES = 1 << 20   # ~1 MiB streamed input block (measured plateau)
_MIN_GRID_STEPS = 8             # keep cross-step double-buffering / both v7x TCs busy
_NEG_BIG = -1e30                # finite "-inf" sentinel


def _cdiv(a, b):
    return -(-a // b)


def _round_up(a, b):
    return -(-a // b) * b


def _get_softmax_dim(ndim):
    # PyTorch's legacy torch.nn.functional._get_softmax_dim heuristic.
    return 0 if ndim in (0, 1, 3) else 1


# ---------------------------------------------------------------------------
# Kernels
# ---------------------------------------------------------------------------

def _softmax_kernel(x_ref, o_ref, *, axis):
    """Plain softmax over `axis` of the block (mask=None specialization)."""
    x = x_ref[...].astype(jnp.float32)
    x_max = jnp.max(x, axis=axis, keepdims=True)
    e = jnp.exp(x - x_max)
    denom = jnp.sum(e, axis=axis, keepdims=True)
    inv = pl.reciprocal(denom, approx=True)            # EUP slot (nearly free)
    inv = inv * (jnp.float32(2.0) - denom * inv)       # one Newton step
    o_ref[...] = (e * inv).astype(o_ref.dtype)


def _masked_softmax_kernel(x_ref, m_ref, o_ref, *, axis):
    """Masked softmax over `axis`; m_ref broadcasts against x_ref (dims 1/full)."""
    x = x_ref[...].astype(jnp.float32)
    keep = m_ref[...] != 0                              # nonzero = keep
    neg_big = jnp.float32(_NEG_BIG)
    xm = jnp.where(keep, x, neg_big)
    row_max = jnp.max(xm, axis=axis, keepdims=True)
    # exp(-1e30 - row_max) underflows to exactly 0 for masked positions
    # whenever the row has any kept value, so no second select is needed.
    e = jnp.exp(xm - row_max)
    denom = jnp.sum(e, axis=axis, keepdims=True)        # >= 1, never 0
    inv = pl.reciprocal(denom, approx=True)
    inv = inv * (jnp.float32(2.0) - denom * inv)
    # Fully masked rows have row_max == -1e30: force the whole row to 0.
    inv = jnp.where(row_max > neg_big, inv, jnp.float32(0.0))
    o_ref[...] = (e * inv).astype(o_ref.dtype)


# ---------------------------------------------------------------------------
# Layout / tiling helpers
# ---------------------------------------------------------------------------

def _group_dims(x_shape, m_shape, dim):
    """Collapse contiguous runs of dims sharing the same mask-broadcast status.

    Returns (x_sizes, m_sizes, s_idx): grouped extents for the input and the
    mask (mask extent is 1 for fully-broadcast groups, equal otherwise) plus
    the index of the softmax group.  All implied reshapes are contiguous
    collapses, i.e. copy-free.
    """
    x_sizes, m_sizes, status = [], [], []
    for i, (d, m) in enumerate(zip(x_shape, m_shape)):
        d, m = int(d), int(m)
        if i == dim:
            x_sizes.append(d); m_sizes.append(m); status.append("S")
        elif d == 1 and x_sizes and status[-1] != "S":
            pass                                        # size-1 dims fold for free
        else:
            st = "B" if (m == 1 and d != 1) else "M"
            if x_sizes and status[-1] == st:
                x_sizes[-1] *= d
                m_sizes[-1] *= m
            else:
                x_sizes.append(d); m_sizes.append(m); status.append(st)
    s_idx = status.index("S")
    if len(x_sizes) == 1:                               # softmax over the only group
        x_sizes = [1] + x_sizes
        m_sizes = [1] + m_sizes
        s_idx = 1
    return x_sizes, m_sizes, s_idx


def _tile_sizes(sizes, s_idx, itemsize):
    """Per-group block extents.

    The softmax group is always taken in full; the lane (last) and sublane
    (second-to-last) groups are tiled to keep the streamed block around
    _TARGET_BLOCK_BYTES; every other group gets extent 1 (one grid axis each).
    """
    rank = len(sizes)
    itemsize = max(int(itemsize), 1)
    block = [1] * rank
    block[s_idx] = sizes[s_idx]
    last, sec = rank - 1, rank - 2

    if last != s_idx:                                   # tile the lane axis
        resident = itemsize * sizes[s_idx]              # softmax extent is always resident
        tt = max(128, _TARGET_BLOCK_BYTES // max(resident, 1))
        tt = min(tt, sizes[last])
        if tt < sizes[last]:
            tt = max(128, (tt // 128) * 128)
        block[last] = tt

    if sec >= 0 and sec != s_idx:                       # tile the sublane axis
        resident = _round_up(block[last], 128) * itemsize
        if s_idx not in (last, sec):
            resident *= sizes[s_idx]
        tm = max(8, _TARGET_BLOCK_BYTES // max(resident, 1))
        tm = min(tm, sizes[sec])
        if tm < sizes[sec]:
            tm = max(8, (tm // 8) * 8)
        block[sec] = tm
        # Keep >= _MIN_GRID_STEPS grid steps when the row count allows it so
        # the BlockSpec pipeline (and both v7x TensorCores) stays busy.
        other_steps = 1
        for i in range(rank):
            if i != sec:
                other_steps *= _cdiv(sizes[i], block[i])
        if other_steps < _MIN_GRID_STEPS and block[sec] > 8:
            want = _cdiv(_MIN_GRID_STEPS, other_steps)
            cap = max(8, (_cdiv(sizes[sec], want) // 8) * 8)
            block[sec] = min(block[sec], cap)
    return block


def _padded_block_bytes(block, itemsize):
    """VMEM footprint estimate including lane (128) / sublane (8) padding."""
    s = [int(v) for v in block]
    if len(s) >= 1:
        s[-1] = _round_up(s[-1], 128)
    if len(s) >= 2:
        s[-2] = _round_up(s[-2], 8)
    n = 1
    for v in s:
        n *= v
    return n * int(itemsize)


# ---------------------------------------------------------------------------
# Public wrapper
# ---------------------------------------------------------------------------

def masked_softmax(x, mask=None, dim=None):
    """Softmax along `dim`, with `mask` (0 = masked, nonzero = keep) or None."""
    x = jnp.asarray(x)
    ndim = x.ndim
    if ndim == 0:
        raise ValueError("masked_softmax requires at least a 1-D input")
    if dim is None:
        dim = _get_softmax_dim(ndim)
    dim = dim % ndim
    out_dtype = x.dtype

    # --- normalize / validate the mask; no broadcast materialization ---
    if mask is None:
        m_shape = tuple(x.shape)                 # "all match" for the grouping pass
    else:
        mask = jnp.asarray(mask)
        if mask.ndim > ndim:
            raise ValueError("mask rank exceeds input rank")
        m_shape = (1,) * (ndim - mask.ndim) + tuple(mask.shape)
        for d, m in zip(x.shape, m_shape):
            if m not in (1, d):
                raise ValueError(
                    f"mask shape {tuple(mask.shape)} is not broadcastable with "
                    f"input shape {tuple(x.shape)}")
        if mask.dtype == jnp.bool_:
            mask = mask.astype(jnp.int8)         # tiny elementwise cast, no broadcast
        mask = mask.reshape(m_shape)             # copy-free (adds leading 1s only)

    # --- canonical grouped layout (copy-free reshapes only) ---
    x_sizes, m_sizes, s_idx = _group_dims(x.shape, m_shape, dim)
    rank = len(x_sizes)
    x_g = x.reshape(x_sizes)

    block = _tile_sizes(x_sizes, s_idx, x.dtype.itemsize)
    grid = tuple(_cdiv(s, b) for s, b in zip(x_sizes, block))

    def _identity_index_map(*g):
        return g

    x_spec = pl.BlockSpec(tuple(block), _identity_index_map)
    out_spec = pl.BlockSpec(tuple(block), _identity_index_map)

    in_specs = [x_spec]
    args = [x_g]
    m_block = None
    if mask is None:
        kernel = functools.partial(_softmax_kernel, axis=s_idx)
    else:
        kernel = functools.partial(_masked_softmax_kernel, axis=s_idx)
        is_match = tuple(m_sizes[i] == x_sizes[i] for i in range(rank))
        m_block = tuple(block[i] if is_match[i] else 1 for i in range(rank))

        def _mask_index_map(*g, _match=is_match):
            return tuple(gi if mm else 0 for gi, mm in zip(g, _match))

        in_specs.append(pl.BlockSpec(m_block, _mask_index_map))
        args.append(mask.reshape(m_sizes))

    # --- VMEM limit: a small multiple of the actual double-buffered footprint ---
    xb = _padded_block_bytes(block, x.dtype.itemsize)
    ob = _padded_block_bytes(block, jnp.dtype(out_dtype).itemsize)
    mb = 0 if m_block is None else _padded_block_bytes(m_block, mask.dtype.itemsize)
    interm = 4 * _padded_block_bytes(block, 4)           # f32 temporaries
    est = 2 * (xb + ob + mb) + interm
    vmem_limit = int(min(56 << 20, max(32 << 20, 3 * est)))

    n_elems = 1
    for s in x_sizes:
        n_elems *= int(s)
    mask_bytes = 0 if mask is None else int(mask.size) * int(mask.dtype.itemsize)
    cost = pl.CostEstimate(
        flops=6 * n_elems,
        transcendentals=n_elems,
        bytes_accessed=n_elems * int(x.dtype.itemsize)
        + n_elems * int(jnp.dtype(out_dtype).itemsize)
        + mask_bytes,
    )

    out = pl.pallas_call(
        kernel,
        out_shape=jax.ShapeDtypeStruct(tuple(int(s) for s in x_sizes), out_dtype),
        grid_spec=pltpu.PrefetchScalarGridSpec(
            num_scalar_prefetch=0,
            grid=grid,
            in_specs=in_specs,
            out_specs=out_spec,
        ),
        compiler_params=pltpu.CompilerParams(
            dimension_semantics=("parallel",) * len(grid),
            vmem_limit_bytes=vmem_limit,
        ),
        cost_estimate=cost,
    )(*args)
    return out.reshape(x.shape)


class MaskedSoftmax:
    """Drop-in analogue of torchmasked.nn.MaskedSoftmax."""

    def __init__(self, dim=None):
        self.dim = dim

    def __call__(self, input, mask=None):
        return masked_softmax(input, mask, dim=self.dim)


# ---------------------------------------------------------------------------
# Reference + self-test
# ---------------------------------------------------------------------------

def _reference_masked_softmax(x, mask=None, dim=None):
    if dim is None:
        dim = _get_softmax_dim(x.ndim)
    dim = dim % x.ndim
    x32 = x.astype(jnp.float32)
    if mask is None:
        return jax.nn.softmax(x32, axis=dim).astype(x.dtype)
    m_shape = (1,) * (x.ndim - mask.ndim) + tuple(mask.shape)
    keep = jnp.broadcast_to(mask.reshape(m_shape) != 0, x.shape)
    xm = jnp.where(keep, x32, jnp.float32(_NEG_BIG))
    e = jnp.exp(xm - jnp.max(xm, axis=dim, keepdims=True)) * keep.astype(jnp.float32)
    den = jnp.sum(e, axis=dim, keepdims=True)
    return jnp.where(den > 0, e / jnp.maximum(den, 1e-30), 0.0).astype(x.dtype)


if __name__ == "__main__":
    key = jax.random.PRNGKey(0)
    k1, k2, k3, k4, k5 = jax.random.split(key, 5)

    # 1) Attention-style: softmax over the last dim; the mask broadcasts over
    #    the head axis of the input and is never materialized on the host.
    x1 = jax.random.normal(k1, (2, 4, 16, 16), dtype=jnp.float32)
    m1 = (jax.random.uniform(k2, (2, 1, 16, 16)) > 0.3).astype(jnp.float32)
    out1 = jax.block_until_ready(MaskedSoftmax(dim=-1)(x1, m1))
    ref1 = _reference_masked_softmax(x1, m1, dim=-1)
    np.testing.assert_allclose(np.asarray(out1), np.asarray(ref1),
                               rtol=1e-4, atol=1e-6)

    # 2) Softmax over a middle axis (no host-side moveaxis); the mask also
    #    broadcasts along the softmax axis, so some slices are fully masked
    #    and must come out exactly 0.
    x2 = jax.random.normal(k3, (3, 10, 24), dtype=jnp.float32)
    m2 = (jax.random.uniform(k4, (3, 1, 24)) > 0.5).astype(jnp.int32)
    out2 = jax.block_until_ready(masked_softmax(x2, m2, dim=1))
    ref2 = _reference_masked_softmax(x2, m2, dim=1)
    np.testing.assert_allclose(np.asarray(out2), np.asarray(ref2),
                               rtol=1e-4, atol=1e-6)

    # 3) mask=None + dim=None: mask-free kernel variant, dim resolved with
    #    PyTorch's legacy heuristic (ndim == 3 -> dim 0).
    x3 = jax.random.normal(k5, (8, 16, 32), dtype=jnp.float32)
    out3 = jax.block_until_ready(masked_softmax(x3, None, dim=None))
    ref3 = _reference_masked_softmax(x3, None, dim=None)
    np.testing.assert_allclose(np.asarray(out3), np.asarray(ref3),
                               rtol=1e-4, atol=1e-6)

    print("KERNEL_OK")
</pallas_src>

<mosaic_0001>
module attributes {stable_mosaic.version = 11 : i64} {
  func.func @_masked_softmax_kernel(%arg0: i32, %arg1: i32, %arg2: i32, %arg3: i32, %arg4: memref<1x1x16x16xf32, #tpu.memory_space<vmem>>, %arg5: memref<1x1x16x16xf32, #tpu.memory_space<vmem>>, %arg6: memref<1x1x16x16xf32, #tpu.memory_space<vmem>>) attributes {dimension_semantics = [#tpu.dimension_semantics<parallel>, #tpu.dimension_semantics<parallel>, #tpu.dimension_semantics<parallel>, #tpu.dimension_semantics<parallel>], iteration_bounds = array<i64: 2, 4, 1, 1>, scalar_prefetch = 0 : i64, scratch_operands = 0 : i64, tpu.core_type = #tpu.core_type<tc>, window_params = [{transform_indices = @transform_0, window_bounds = array<i64: 1, 1, 16, 16>}, {transform_indices = @transform_1, window_bounds = array<i64: 1, 1, 16, 16>}, {transform_indices = @transform_2, window_bounds = array<i64: 1, 1, 16, 16>}]} {
    %c0 = arith.constant 0 : index
    %c0_0 = arith.constant 0 : index
    %c0_1 = arith.constant 0 : index
    %c0_2 = arith.constant 0 : index
    %0 = vector.load %arg4[%c0, %c0_0, %c0_1, %c0_2] : memref<1x1x16x16xf32, #tpu.memory_space<vmem>>, vector<1x1x16x16xf32>
    %c0_3 = arith.constant 0 : index
    %c0_4 = arith.constant 0 : index
    %c0_5 = arith.constant 0 : index
    %c0_6 = arith.constant 0 : index
    %1 = vector.load %arg5[%c0_3, %c0_4, %c0_5, %c0_6] : memref<1x1x16x16xf32, #tpu.memory_space<vmem>>, vector<1x1x16x16xf32>
    %cst = arith.constant 0.000000e+00 : f32
    %2 = vector.broadcast %cst : f32 to vector<1x1x16x16xf32>
    %3 = arith.cmpf one, %1, %2 : vector<1x1x16x16xf32>
    %cst_7 = arith.constant -1.000000e+30 : f32
    %4 = vector.broadcast %cst_7 : f32 to vector<1x1x16x16xf32>
    %5 = arith.select %3, %0, %4 : vector<1x1x16x16xi1>, vector<1x1x16x16xf32>
    %cst_8 = arith.constant dense<0xFF800000> : vector<1x1x16xf32>
    %6 = vector.multi_reduction <maximumf>, %5, %cst_8 [3] : vector<1x1x16x16xf32> to vector<1x1x16xf32>
    %7 = vector.shape_cast %6 : vector<1x1x16xf32> to vector<1x1x16x1xf32>
    %8 = vector.broadcast %7 : vector<1x1x16x1xf32> to vector<1x1x16x16xf32>
    %9 = arith.subf %5, %8 : vector<1x1x16x16xf32>
    %10 = math.exp %9 : vector<1x1x16x16xf32>
    %cst_9 = arith.constant dense<0.000000e+00> : vector<1x1x16xf32>
    %11 = vector.multi_reduction <add>, %10, %cst_9 [3] : vector<1x1x16x16xf32> to vector<1x1x16xf32>
    %12 = vector.shape_cast %11 : vector<1x1x16xf32> to vector<1x1x16x1xf32>
    %13 = tpu.reciprocal %12 {approx = true} : vector<1x1x16x1xf32> -> vector<1x1x16x1xf32>
    %14 = arith.mulf %12, %13 : vector<1x1x16x1xf32>
    %cst_10 = arith.constant 2.000000e+00 : f32
    %15 = vector.broadcast %cst_10 : f32 to vector<1x1x16x1xf32>
    %16 = arith.subf %15, %14 : vector<1x1x16x1xf32>
    %17 = arith.mulf %13, %16 : vector<1x1x16x1xf32>
    %cst_11 = arith.constant -1.000000e+30 : f32
    %18 = vector.broadcast %cst_11 : f32 to vector<1x1x16x1xf32>
    %19 = arith.cmpf ogt, %7, %18 : vector<1x1x16x1xf32>
    %cst_12 = arith.constant 0.000000e+00 : f32
    %20 = vector.broadcast %cst_12 : f32 to vector<1x1x16x1xf32>
    %21 = arith.select %19, %17, %20 : vector<1x1x16x1xi1>, vector<1x1x16x1xf32>
    %22 = vector.broadcast %21 : vector<1x1x16x1xf32> to vector<1x1x16x16xf32>
    %23 = arith.mulf %10, %22 : vector<1x1x16x16xf32>
    %c0_13 = arith.constant 0 : index
    %c0_14 = arith.constant 0 : index
    %c0_15 = arith.constant 0 : index
    %c0_16 = arith.constant 0 : index
    %24 = vector.load %arg6[%c0_13, %c0_14, %c0_15, %c0_16] : memref<1x1x16x16xf32, #tpu.memory_space<vmem>>, vector<1x1x16x16xf32>
    tpu.vector_store %arg6[%c0_13, %c0_14, %c0_15, %c0_16], %23 {strides = array<i32>} : memref<1x1x16x16xf32, #tpu.memory_space<vmem>>, vector<1x1x16x16xf32>,
    return
  }
  func.func @transform_0(%arg0: i32, %arg1: i32, %arg2: i32, %arg3: i32) -> (i32, i32, i32, i32) {
    %c0_i32 = arith.constant 0 : i32
    return %arg0, %arg1, %arg2, %arg3 : i32, i32, i32, i32
  }
  func.func @transform_1(%arg0: i32, %arg1: i32, %arg2: i32, %arg3: i32) -> (i32, i32, i32, i32) {
    %c0_i32 = arith.constant 0 : i32
    %c0_i32_0 = arith.constant 0 : i32
    return %arg0, %c0_i32, %arg2, %arg3 : i32, i32, i32, i32
  }
  func.func @transform_2(%arg0: i32, %arg1: i32, %arg2: i32, %arg3: i32) -> (i32, i32, i32, i32) {
    %c0_i32 = arith.constant 0 : i32
    return %arg0, %arg1, %arg2, %arg3 : i32, i32, i32, i32
  }
}

</mosaic_0001>

<llo_original>
// kernel: tpu_custom_call.1
$region0: #{tpu_custom_call.1}
  #allocation0 [shape = 'u32[]', space=smem, size = 0x4, offset = 0x4, fixed_abs, tag = 'smem constant byte address 0x4 - core index']
  #allocation1 [shape = 'u32[144,128]{1,0:T(1,128)}', space=vmem, size = 0x12000, scoped, tag = 'internal scratch']
  %s0 = inlined_call_operand.hbm [shape: f32[2,4,16,16], index: 0, kind: input, shape index: {}]
  %s1 = inlined_call_operand.hbm [shape: f32[2,1,16,16], index: 1, kind: input, shape index: {}]
  %s2 = inlined_call_operand.hbm [shape: f32[2,4,16,16], index: 2, kind: output, shape index: {}]
  %s3 = sld [smem:[#allocation0]]
  $region49: #{tpu_custom_call.1} parent=0
    _
  %s5 = ssub.s32 1, %s3
  %s6 = scalar_select 0, %s5, %s3
  $region1: #{tpu_custom_call.1} parent=0
    #allocation2 [shape = 'u8[16384]{0}', space=vmem, size = 0x4000, scoped, tag = 'input window, operand 0']
    #allocation3 [shape = 's32[2]{0}', space=sflag, size = 0x8, scoped, tag = 'scoped memory for tpu_custom_call.1']
    #allocation4 [shape = 's32[2]{0}', space=sflag, size = 0x8, scoped, tag = 'scoped memory for tpu_custom_call.1']
    #allocation5 [shape = 'u8[16384]{0}', space=vmem, size = 0x4000, scoped, tag = 'input window, operand 1']
    #allocation6 [shape = 's32[2]{0}', space=sflag, size = 0x8, scoped, tag = 'scoped memory for tpu_custom_call.1']
    #allocation7 [shape = 'u8[16384]{0}', space=vmem, size = 0x4000, scoped, tag = 'output window, operand 0']
    %7 = vsyncpa [#allocation3], 0
    %s8 = scalar_lea.sflag [#allocation3], 1
    %9 = vsyncpa %s8, 0
    %10 = vsyncpa [#allocation6], 0
    %s11 = scalar_lea.sflag [#allocation6], 1
    %12 = vsyncpa %s11, 0
    %13 = vsyncpa [#allocation4], 0
    %s14 = scalar_lea.sflag [#allocation4], 1
    %15 = vsyncpa %s14, 0
    loop: start=0, step=1, limit=10
    $region2: #{tpu_custom_call.1} parent=1 // loop_pre_header
      _
    $region3: #{tpu_custom_call.1} parent=1 // loop_header
      %s17 = sphi 0, %s21
      %p18 = scmp.ge.s32.totalorder %s17, 10
      %s24 = sphi 0, %s50
      %s25 = sphi 0, %s46
      %s26 = sphi 0, %s42
      %s27 = sphi 0, %s38
      %s28 = sphi 0, %s24
      %s29 = sphi 0, %s25
      %s30 = sphi 0, %s26
      %s31 = sphi 0, %s27
      %s32 = sphi 0, %s28
      %s33 = sphi 0, %s29
      %s34 = sphi 0, %s30
      %s35 = sphi 0, %s31
      %s59 = sphi 0, %s61
      %s62 = sphi 0, %s59
      %s63 = sphi 0, %s62
      %s79 = sphi 0, %s63
      %s89 = sphi 0, %s91
      %s92 = sphi 0, %s89
      %s93 = sphi 0, %s92
      %s109 = sphi 0, %s93
      %s121 = sphi 0, %s123
      %s124 = sphi 0, %s121
      %s125 = sphi 0, %s124
      %s141 = sphi 0, %s125
    $region4: #{tpu_custom_call.1} parent=1 // loop_header_branch
      %20 = sbr.rel (%p18) target = $region8
    $region5: #{tpu_custom_call.1} parent=1 // loop_body
      %s22 = ssub.s32 %s17, 1
      %s23 = ssub.s32 %s17, 2
      %s36 = sadd.s32 1, %s27
      %p37 = scmp.ge.s32.totalorder %s36, 1
      %s38 = scalar_select %p37, 0, %s36
      %s39 = sadd.s32 1, %s26
      %s40 = scalar_select %p37, %s39, %s26
      %p41 = scmp.ge.s32.totalorder %s40, 1
      %s42 = scalar_select %p41, 0, %s40
      %s43 = sadd.s32 1, %s25
      %s44 = scalar_select %p41, %s43, %s25
      %p45 = scmp.ge.s32.totalorder %s44, 4
      %s46 = scalar_select %p45, 0, %s44
      %s47 = sadd.s32 1, %s24
      %s48 = scalar_select %p45, %s47, %s24
      %p49 = scmp.ge.s32.totalorder %s48, 2
      %s50 = scalar_select %p49, 0, %s48
      %s51 = ssub.s32 %s24, %s50
      %s52 = ssub.s32 %s25, %s46
      %s53 = sor.u32 %s51, %s52
      %s54 = ssub.s32 %s26, %s42
      %s55 = sor.u32 %s53, %s54
      %s56 = ssub.s32 %s27, %s38
      %s57 = sor.u32 %s55, %s56
      %p58 = scmp.eq.s32.totalorder %s57, 0
      %s60 = sadd.s32 %s59, 1
      %s61 = scalar_select %p58, %s59, %s60
      %p64 = pneg %p58
      %p65 = scmp.eq.s32.totalorder %s17, 7
      %p66 = por %p64, %p65
      %p67 = scmp.ne.s32.totalorder %s59, %s62
      %p68 = scmp.eq.s32.totalorder %s17, 0
      %p69 = por %p67, %p68
      %p70 = scmp.ne.s32.totalorder %s59, %s62
      %p71 = scmp.eq.s32.totalorder %s22, 7
      %p72 = por %p70, %p71
      %p73 = scmp.ne.s32.totalorder %s62, %s63
      %p74 = scmp.eq.s32.totalorder %s22, 0
      %p75 = por %p73, %p74
      %p76 = scmp.ne.s32.totalorder %s62, %s63
      %p77 = scmp.eq.s32.totalorder %s23, 7
      %p78 = por %p76, %p77
      %p80 = scmp.ne.s32.totalorder %s63, %s79
      %p81 = scmp.eq.s32.totalorder %s23, 0
      %p82 = por %p80, %p81
      %s83 = ssub.s32 %s24, %s50
      %s84 = ssub.s32 %s26, %s42
      %s85 = sor.u32 %s83, %s84
      %s86 = ssub.s32 %s27, %s38
      %s87 = sor.u32 %s85, %s86
      %p88 = scmp.eq.s32.totalorder %s87, 0
      %s90 = sadd.s32 %s89, 1
      %s91 = scalar_select %p88, %s89, %s90
      %p94 = pneg %p88
      %p95 = scmp.eq.s32.totalorder %s17, 7
      %p96 = por %p94, %p95
      %p97 = scmp.ne.s32.totalorder %s89, %s92
      %p98 = scmp.eq.s32.totalorder %s17, 0
      %p99 = por %p97, %p98
      %p100 = scmp.ne.s32.totalorder %s89, %s92
      %p101 = scmp.eq.s32.totalorder %s22, 7
      %p102 = por %p100, %p101
      %p103 = scmp.ne.s32.totalorder %s92, %s93
      %p104 = scmp.eq.s32.totalorder %s22, 0
      %p105 = por %p103, %p104
      %p106 = scmp.ne.s32.totalorder %s92, %s93
      %p107 = scmp.eq.s32.totalorder %s23, 7
      %p108 = por %p106, %p107
      %p110 = scmp.ne.s32.totalorder %s93, %s109
      %p111 = scmp.eq.s32.totalorder %s23, 0
      %p112 = por %p110, %p111
      %s113 = ssub.s32 %s24, %s50
      %s114 = ssub.s32 %s25, %s46
      %s115 = sor.u32 %s113, %s114
      %s116 = ssub.s32 %s26, %s42
      %s117 = sor.u32 %s115, %s116
      %s118 = ssub.s32 %s27, %s38
      %s119 = sor.u32 %s117, %s118
      %p120 = scmp.eq.s32.totalorder %s119, 0
      %s122 = sadd.s32 %s121, 1
      %s123 = scalar_select %p120, %s121, %s122
      %p126 = pneg %p120
      %p127 = scmp.eq.s32.totalorder %s17, 7
      %p128 = por %p126, %p127
      %p129 = scmp.ne.s32.totalorder %s121, %s124
      %p130 = scmp.eq.s32.totalorder %s17, 0
      %p131 = por %p129, %p130
      %p132 = scmp.ne.s32.totalorder %s121, %s124
      %p133 = scmp.eq.s32.totalorder %s22, 7
      %p134 = por %p132, %p133
      %p135 = scmp.ne.s32.totalorder %s124, %s125
      %p136 = scmp.eq.s32.totalorder %s22, 0
      %p137 = por %p135, %p136
      %p138 = scmp.ne.s32.totalorder %s124, %s125
      %p139 = scmp.eq.s32.totalorder %s23, 7
      %p140 = por %p138, %p139
      %p142 = scmp.ne.s32.totalorder %s125, %s141
      %p143 = scmp.eq.s32.totalorder %s23, 0
      %p144 = por %p142, %p143
      %p145 = scmp.le.s32.totalorder 1, %s17
      %p146 = scmp.lt.s32.totalorder %s17, 9
      %p147 = pnand %p145, %p146
      %p148 = pneg %p147
      // Predicated region
      $region9: #{tpu_custom_call.1} parent=5 // pred_check
        _
      $region10: #{tpu_custom_call.1} parent=5 // pred_check_branch
        %150 = sbr.rel (%p147) target = $region12
      $region11: #{tpu_custom_call.1} parent=5 // pred_region
        %s151 = ssub.s32 %s17, 1
      $region12: #{tpu_custom_call.1} parent=5 // pred_fallthru
        _
      %p152 = scmp.lt.s32.totalorder %s17, 8
      // Predicated region
      $region13: #{tpu_custom_call.1} parent=5 // pred_check
        %p153 = pneg %p152
      $region14: #{tpu_custom_call.1} parent=5 // pred_check_branch
        %155 = sbr.rel (%p153) target = $region16
      $region15: #{tpu_custom_call.1} parent=5 // pred_region
        // Predicated region
        $region17: #{tpu_custom_call.1} parent=15 // pred_check
          %p156 = pneg %p69
        $region18: #{tpu_custom_call.1} parent=15 // pred_check_branch
          %158 = sbr.rel (%p156) target = $region20
        $region19: #{tpu_custom_call.1} parent=15 // pred_region
          %s159 = sand.u32 %s59, 1
          %s160 = scalar_lea.sflag [#allocation3], %s159
          %s161 = sand.u32 %s59, 1
          %s162 = smul.addr %s161, 16
          %s163 = scalar_lea.vmem [#allocation2], %s162
          %s164 = smul.u32 2, %s26
          %s166 = ssub.s32 256, 256
          %167 = vsyncadd %s160, %s166
          %s168 = sadd.s32 %s27, %s164
          %s169 = smul.addr %s25, 2
          %s170 = sadd.s32 %s168, %s169
          %s171 = smul.addr %s24, 8
          %s172 = sadd.s32 %s170, %s171
          %s173 = smul.addr %s172, 128
          %s174 = scalar_lea.hbm %s0, %s173
          %s175 = sshll.u32 %s163, 4
          %s176 = int_to_ptr.vmem [resolvable:$true] %s175
          %181 = dma.hbm_to_vmem [thread:$0]  %s174, 256, %s176, %s160, 128, 128, 8
        $region20: #{tpu_custom_call.1} parent=15 // pred_fallthru
          _
        // Predicated region
        $region21: #{tpu_custom_call.1} parent=15 // pred_check
          %p182 = pneg %p99
        $region22: #{tpu_custom_call.1} parent=15 // pred_check_branch
          %184 = sbr.rel (%p182) target = $region24
        $region23: #{tpu_custom_call.1} parent=15 // pred_region
          %s185 = sand.u32 %s89, 1
          %s186 = scalar_lea.sflag [#allocation6], %s185
          %s187 = sand.u32 %s89, 1
          %s188 = smul.addr %s187, 16
          %s189 = scalar_lea.vmem [#allocation5], %s188
          %s190 = smul.u32 2, %s26
          %s192 = ssub.s32 256, 256
          %193 = vsyncadd %s186, %s192
          %s194 = sadd.s32 %s27, %s190
          %s195 = smul.addr %s24, 2
          %s196 = sadd.s32 %s194, %s195
          %s197 = smul.addr %s196, 128
          %s198 = scalar_lea.hbm %s1, %s197
          %s199 = sshll.u32 %s189, 4
          %s200 = int_to_ptr.vmem [resolvable:$true] %s199
          %205 = dma.hbm_to_vmem [thread:$0]  %s198, 256, %s200, %s186, 128, 128, 8
        $region24: #{tpu_custom_call.1} parent=15 // pred_fallthru
          _
      $region16: #{tpu_custom_call.1} parent=5 // pred_fallthru
        _
      %p206 = scmp.le.s32.totalorder 1, %s17
      %p207 = scmp.lt.s32.totalorder %s17, 9
      %p208 = pnand %p206, %p207
      %p209 = pneg %p208
      // Predicated region
      $region25: #{tpu_custom_call.1} parent=5 // pred_check
        _
      $region26: #{tpu_custom_call.1} parent=5 // pred_check_branch
        %211 = sbr.rel (%p208) target = $region28
      $region27: #{tpu_custom_call.1} parent=5 // pred_region
        %s212 = ssub.s32 %s17, 1
        %s213 = sand.u32 %s62, 1
        %s214 = scalar_lea.sflag [#allocation3], %s213
        %s215 = sand.u32 %s62, 1
        %s216 = smul.addr %s215, 16
        %s217 = scalar_lea.vmem [#allocation2], %s216
        // Predicated region
        $region29: #{tpu_custom_call.1} parent=27 // pred_check
          %p218 = pneg %p75
        $region30: #{tpu_custom_call.1} parent=27 // pred_check_branch
          %220 = sbr.rel (%p218) target = $region32
        $region31: #{tpu_custom_call.1} parent=27 // pred_region
          %221 = dma.done %s214, 256
        $region32: #{tpu_custom_call.1} parent=27 // pred_fallthru
          _
        %s222 = sand.u32 %s92, 1
        %s223 = scalar_lea.sflag [#allocation6], %s222
        %s224 = sand.u32 %s92, 1
        %s225 = smul.addr %s224, 16
        %s226 = scalar_lea.vmem [#allocation5], %s225
        // Predicated region
        $region33: #{tpu_custom_call.1} parent=27 // pred_check
          %p227 = pneg %p105
        $region34: #{tpu_custom_call.1} parent=27 // pred_check_branch
          %229 = sbr.rel (%p227) target = $region36
        $region35: #{tpu_custom_call.1} parent=27 // pred_region
          %230 = dma.done %s223, 256
        $region36: #{tpu_custom_call.1} parent=27 // pred_fallthru
          _
        %s231 = sand.u32 %s62, 1
        %s232 = scalar_lea.sflag [#allocation3], %s231
        %s233 = sand.u32 %s62, 1
        %s234 = smul.addr %s233, 16
        %s235 = scalar_lea.vmem [#allocation2], %s234
        %p236 = pneg %p75
        %p237 = pneg %p72
        %s238 = sand.u32 %s92, 1
        %s239 = scalar_lea.sflag [#allocation6], %s238
        %s240 = sand.u32 %s92, 1
        %s241 = smul.addr %s240, 16
        %s242 = scalar_lea.vmem [#allocation5], %s241
        %p243 = pneg %p105
        %p244 = pneg %p102
        %p245 = pneg %p137
        %p246 = pneg %p134
        %s247 = sand.u32 %s124, 1
        %s248 = scalar_lea.sflag [#allocation4], %s247
        %s249 = sand.u32 %s124, 1
        %s250 = smul.addr %s249, 16
        %s251 = scalar_lea.vmem [#allocation7], %s250
        %s252 = smul.u32 2, %s30
        %s253 = smul.u32 2, %s30
        %s254 = smul.u32 2, %s30
        %v255 = vld [vmem:[%s217] sm:$0xff]
        %v256 = vld [vmem:[%s217 + $0x8] sm:$0xff]
        %v257 = vld [vmem:[%s226] sm:$0xff]
        %v258 = vld [vmem:[%s226 + $0x8] sm:$0xff]
        %vm259 = vcmp.ne.f32.partialorder %v257, 0.0
        %vm260 = vcmp.ne.f32.partialorder %v258, 0.0
        %v261 = vsel %vm259, %v255, -1e+30
        %v262 = vsel %vm260, %v256, -1e+30
        %vm263 = vcmask 130048
        %v264 = vsel %vm263, %v261, -inf
        %265 = vmax.xlane.f32.xlu0 %v264
        %v266 = vpop.xlane.xlu0 %265
        %v267 = vsel %vm263, %v262, -inf
        %268 = vmax.xlane.f32.xlu0 %v267
        %v269 = vpop.xlane.xlu0 %268
        %v270 = vsub.f32 %v261, %v266
        %v271 = vsub.f32 %v262, %v269
        %v272 = vmul.f32 %v270, 1.442695
        %v273 = vpow.pop %v272
        %v274 = vmul.f32 %v271, 1.442695
        %v275 = vpow.pop %v274
        %v276 = vsel %vm263, %v273, 0.0
        %277 = vadd.xlane.f32.xlu0 %v276
        %v278 = vpop.xlane.xlu0 %277
        %v279 = vsel %vm263, %v275, 0.0
        %280 = vadd.xlane.f32.xlu0 %v279
        %v281 = vpop.xlane.xlu0 %280
        %v282 = vrcp.pop %v278
        %v283 = vrcp.pop %v281
        %v284 = vmul.f32 %v278, %v282
        %v285 = vmul.f32 %v281, %v283
        %v286 = vsub.f32 2.0, %v284
        %v287 = vsub.f32 2.0, %v285
        %v288 = vmul.f32 %v282, %v286
        %v289 = vmul.f32 %v283, %v287
        %vm290 = vcmp.gt.f32.partialorder %v266, -1e+30
        %vm291 = vcmp.gt.f32.partialorder %v269, -1e+30
        %v292 = vsel %vm290, %v288, 0.0
        %v293 = vsel %vm291, %v289, 0.0
        %v294 = vmul.f32 %v273, %v292
        %v295 = vmul.f32 %v275, %v293
        %296 = vst.msk [vmem:[%s251] sm:$0xff] %vm263, %v294
        %297 = vst.msk [vmem:[%s251 + $0x8] sm:$0xff] %vm263, %v295
        %s298 = sand.u32 %s124, 1
        %s299 = scalar_lea.sflag [#allocation4], %s298
        %s300 = sand.u32 %s124, 1
        %s301 = smul.addr %s300, 16
        %s302 = scalar_lea.vmem [#allocation7], %s301
        // Predicated region
        $region37: #{tpu_custom_call.1} parent=27 // pred_check
          %p303 = pneg %p134
        $region38: #{tpu_custom_call.1} parent=27 // pred_check_branch
          %305 = sbr.rel (%p303) target = $region40
        $region39: #{tpu_custom_call.1} parent=27 // pred_region
          %s306 = smul.u32 2, %s30
          %s308 = ssub.s32 256, 256
          %309 = vsyncadd %s299, %s308
          %s310 = sadd.s32 %s31, %s306
          %s311 = smul.addr %s29, 2
          %s312 = sadd.s32 %s310, %s311
          %s313 = smul.addr %s28, 8
          %s314 = sadd.s32 %s312, %s313
          %s315 = smul.addr %s314, 128
          %s316 = scalar_lea.hbm %s2, %s315
          %s317 = sshll.u32 %s302, 4
          %s318 = int_to_ptr.vmem [resolvable:$true] %s317
          %323 = dma.vmem_to_hbm [thread:$0]  %s318, 256, %s316, %s299, 128, 128, 8
        $region40: #{tpu_custom_call.1} parent=27 // pred_fallthru
          _
      $region28: #{tpu_custom_call.1} parent=5 // pred_fallthru
        _
      %p324 = scmp.le.s32.totalorder 2, %s17
      // Predicated region
      $region41: #{tpu_custom_call.1} parent=5 // pred_check
        %p325 = pneg %p324
      $region42: #{tpu_custom_call.1} parent=5 // pred_check_branch
        %327 = sbr.rel (%p325) target = $region44
      $region43: #{tpu_custom_call.1} parent=5 // pred_region
        %s328 = ssub.s32 %s17, 2
        // Predicated region
        $region45: #{tpu_custom_call.1} parent=43 // pred_check
          %p329 = pneg %p140
        $region46: #{tpu_custom_call.1} parent=43 // pred_check_branch
          %331 = sbr.rel (%p329) target = $region48
        $region47: #{tpu_custom_call.1} parent=43 // pred_region
          %s332 = sand.u32 %s125, 1
          %s333 = scalar_lea.sflag [#allocation4], %s332
          %s334 = sand.u32 %s125, 1
          %s335 = smul.addr %s334, 16
          %s336 = scalar_lea.vmem [#allocation7], %s335
          %337 = dma.done %s333, 256
        $region48: #{tpu_custom_call.1} parent=43 // pred_fallthru
          _
      $region44: #{tpu_custom_call.1} parent=5 // pred_fallthru
        _
    $region6: #{tpu_custom_call.1} parent=1 // loop_footer
      %s21 = sadd.s32 1, %s17
    $region7: #{tpu_custom_call.1} parent=1 // loop_footer_branch
      %16 = sbr.rel target = $region3
    $region8: #{tpu_custom_call.1} parent=1 // loop_exit
      _
    %338 = vsyncpa [#allocation3], 1
    %s339 = scalar_lea.sflag [#allocation3], 1
    %340 = vsyncpa %s339, 1
    %341 = vsyncpa [#allocation6], 1
    %s342 = scalar_lea.sflag [#allocation6], 1
    %343 = vsyncpa %s342, 1
    %344 = vsyncpa [#allocation4], 1
    %s345 = scalar_lea.sflag [#allocation4], 1
    %346 = vsyncpa %s345, 1

</llo_original>
